<compile_context>
chip_gen: v7x
topology: tpu7x:2x2x1
jax: 0.10.0
libtpu: 0.0.40
codegen_flags: <defaults>
</compile_context>

<pallas_src>
import functools
import math

import jax
import jax.numpy as jnp
from jax import lax
from jax.experimental import pallas as pl
from jax.experimental.pallas import tpu as pltpu


_NL = 128  # lane width used for the lane-dense m/l scratch


def _lane_bcast(x, n):
    """Broadcast a lane-replicated (rows, 128) f32 value to (rows, n)."""
    if n == _NL:
        return x
    if n % _NL == 0:
        return jnp.tile(x, (1, n // _NL))
    # Fallback for narrow lane counts (e.g. head_dim < 128): width-1 broadcast.
    return x[:, :1]


# ------------------------------- kernel --------------------------------------
def _attn_fwd_kernel(q_ref, k_ref, v_ref, o_ref, m_sc, l_sc, acc_sc, *,
                     scale, sk, tk_eff, mask_kv, recip_approx):
    # q_ref: (tq, d); k_ref/v_ref: (tk, d); o_ref: (tq, d)
    kv = pl.program_id(2)

    @pl.when(kv == 0)
    def _():
        m_sc[...] = jnp.full(m_sc.shape, -jnp.inf, jnp.float32)
        l_sc[...] = jnp.zeros(l_sc.shape, jnp.float32)
        acc_sc[...] = jnp.zeros(acc_sc.shape, jnp.float32)

    # Keep the native dtype (bf16 stays bf16) so the MXU takes its fast path;
    # the scale is a trivial VPU multiply on the (tq, d) tile.
    q = q_ref[...] * scale
    k = k_ref[...]
    v = v_ref[...]

    # scores = q @ k^T  (contract head_dim; no materialized transpose), f32 acc.
    s = lax.dot_general(q, k, (((1,), (1,)), ((), ())),
                        preferred_element_type=jnp.float32)      # (tq, tk)

    if mask_kv:
        # Tail block: columns >= sk are garbage -> exclude from the softmax,
        # and zero the matching V rows so 0 * garbage cannot produce NaN.
        col = lax.broadcasted_iota(jnp.int32, s.shape, 1) + kv * tk_eff
        s = jnp.where(col < sk, s, -jnp.inf)
        row = lax.broadcasted_iota(jnp.int32, v.shape, 0) + kv * tk_eff
        v = jnp.where(row < sk, v, jnp.zeros((), v.dtype))

    m_prev = m_sc[...]                                    # (tq, 128)
    l_prev = l_sc[...]                                    # (tq, 128)
    m_cur = s.max(axis=-1, keepdims=True)                 # (tq, 1)
    m_new = jnp.maximum(m_prev, m_cur)                    # (tq, 128)
    alpha = jnp.exp(m_prev - m_new)                       # (tq, 128)
    p = jnp.exp(s - _lane_bcast(m_new, s.shape[-1]))      # (tq, tk) f32

    l_sc[...] = alpha * l_prev + p.sum(axis=-1, keepdims=True)
    pv = jnp.dot(p.astype(v.dtype), v, preferred_element_type=jnp.float32)
    acc_sc[...] = _lane_bcast(alpha, acc_sc.shape[-1]) * acc_sc[...] + pv
    m_sc[...] = m_new

    @pl.when(kv == pl.num_programs(2) - 1)
    def _():
        inv_l = pl.reciprocal(l_sc[...], approx=recip_approx)   # EUP slot
        o_ref[...] = (acc_sc[...] *
                      _lane_bcast(inv_l, acc_sc.shape[-1])).astype(o_ref.dtype)


# ------------------------------- wrapper --------------------------------------
def torch_dot_product_attention(query, key, value, attention_mask=None, *,
                                kv_channels=None, tq: int = 256, tk: int = 512):
    """Pallas implementation of TorchDotProductAttention.forward.

    query/key/value: [s, b, np, hn]. Returns [sq, b, np*hn].
    """
    # TODO(synk): attention_mask support (additive -inf fill before softmax).
    assert attention_mask is None, "mask not implemented in this kernel"

    sq, b, h, d = query.shape
    sk = key.shape[0]
    if kv_channels is None:
        kv_channels = d
    scale = 1.0 / math.sqrt(kv_channels)

    # Tile policy: full extent for short sequences (always legal), otherwise
    # the target tile with a cdiv grid; the partial tail tile is masked
    # in-kernel (KV) or simply dropped on writeback (Q).
    tq_eff = sq if sq <= tq else tq
    tk_eff = sk if sk <= tk else tk
    grid = (b * h, pl.cdiv(sq, tq_eff), pl.cdiv(sk, tk_eff))
    mask_kv = (sk % tk_eff) != 0
    recip_approx = query.dtype != jnp.dtype(jnp.float32)

    kernel = functools.partial(_attn_fwd_kernel, scale=scale, sk=sk,
                               tk_eff=tk_eff, mask_kv=mask_kv,
                               recip_approx=recip_approx)

    itemsize = query.dtype.itemsize
    cost = pl.CostEstimate(
        flops=4 * b * h * sq * sk * d,
        transcendentals=b * h * sq * sk,
        bytes_accessed=int((query.size + key.size + value.size
                            + sq * b * h * d) * itemsize))
    cparams = pltpu.CompilerParams(
        dimension_semantics=("parallel", "parallel", "arbitrary"),
        vmem_limit_bytes=48 * 1024 * 1024)   # headroom on v7x's 64 MiB VMEM
    scratch = [pltpu.VMEM((tq_eff, _NL), jnp.float32),   # running max (lane-dense)
               pltpu.VMEM((tq_eff, _NL), jnp.float32),   # running denom
               pltpu.VMEM((tq_eff, d), jnp.float32)]     # output accumulator

    if d % 128 == 0:
        # Fast path: no transposes. [s, b, np, hn] -> (s, b*h*d) is a free
        # reshape; each head's columns live at a 128-aligned lane offset.
        q2 = query.reshape(sq, b * h * d)
        k2 = key.reshape(sk, b * h * d)
        v2 = value.reshape(sk, b * h * d)
        out2 = pl.pallas_call(
            kernel,
            out_shape=jax.ShapeDtypeStruct((sq, b * h * d), query.dtype),
            grid_spec=pltpu.PrefetchScalarGridSpec(
                num_scalar_prefetch=0,
                grid=grid,
                in_specs=[
                    pl.BlockSpec((tq_eff, d), lambda bh, i, j: (i, bh)),
                    pl.BlockSpec((tk_eff, d), lambda bh, i, j: (j, bh)),
                    pl.BlockSpec((tk_eff, d), lambda bh, i, j: (j, bh)),
                ],
                out_specs=pl.BlockSpec((tq_eff, d), lambda bh, i, j: (i, bh)),
                scratch_shapes=scratch,
            ),
            compiler_params=cparams,
            cost_estimate=cost,
        )(q2, k2, v2)
        return out2.reshape(sq, b, h * d)

    # General path (head_dim not 128-aligned): transpose to [b*h, s, d].
    def to_bh(x):
        return jnp.transpose(x, (1, 2, 0, 3)).reshape(b * h, x.shape[0], d)

    q3, k3, v3 = to_bh(query), to_bh(key), to_bh(value)
    out3 = pl.pallas_call(
        kernel,
        out_shape=jax.ShapeDtypeStruct((b * h, sq, d), query.dtype),
        grid_spec=pltpu.PrefetchScalarGridSpec(
            num_scalar_prefetch=0,
            grid=grid,
            in_specs=[
                pl.BlockSpec((None, tq_eff, d), lambda bh, i, j: (bh, i, 0)),
                pl.BlockSpec((None, tk_eff, d), lambda bh, i, j: (bh, j, 0)),
                pl.BlockSpec((None, tk_eff, d), lambda bh, i, j: (bh, j, 0)),
            ],
            out_specs=pl.BlockSpec((None, tq_eff, d), lambda bh, i, j: (bh, i, 0)),
            scratch_shapes=scratch,
        ),
        compiler_params=cparams,
        cost_estimate=cost,
    )(q3, k3, v3)
    out = out3.reshape(b, h, sq, d)
    return jnp.transpose(out, (2, 0, 1, 3)).reshape(sq, b, h * d)


# ------------------------------ reference -------------------------------------
def torch_dot_product_attention_ref(query, key, value, kv_channels=None):
    sq, b, h, d = query.shape
    if kv_channels is None:
        kv_channels = d
    qf = query.astype(jnp.float32)
    kf = key.astype(jnp.float32)
    vf = value.astype(jnp.float32)
    scores = jnp.einsum("qbhd,kbhd->bhqk", qf, kf) / math.sqrt(kv_channels)
    probs = jax.nn.softmax(scores, axis=-1).astype(query.dtype)
    ctx = jnp.einsum("bhqk,kbhd->qbhd", probs.astype(jnp.float32), vf)
    return ctx.reshape(sq, b, h * d).astype(query.dtype)


# --------------------------------- demo ----------------------------------------
if __name__ == "__main__":
    root = jax.random.PRNGKey(0)

    def make(key, sq, sk, b, h, d, dtype):
        kq, kk, kv_ = jax.random.split(key, 3)
        q = jax.random.normal(kq, (sq, b, h, d), dtype=jnp.float32).astype(dtype)
        k = jax.random.normal(kk, (sk, b, h, d), dtype=jnp.float32).astype(dtype)
        v = jax.random.normal(kv_, (sk, b, h, d), dtype=jnp.float32).astype(dtype)
        return q, k, v

    cases = [
        # (sq, sk, b, h, d, dtype, tq, tk, atol, rtol)
        # 1) small f32, general path, full-extent tiles (mirrors the module's
        #    tiny test shapes: seq=8, batch=2, heads=2, kv_channels=32).
        (8, 8, 2, 2, 32, jnp.float32, 256, 512, 2e-5, 2e-5),
        # 2) bf16, d=128 fast path (no transposes), small tiles to exercise
        #    cdiv grids, the KV tail mask, and the approx reciprocal.
        (40, 40, 2, 1, 128, jnp.bfloat16, 16, 16, 3e-2, 3e-2),
        # 3) f32 general path with partial Q tile and masked KV tail.
        (20, 36, 1, 3, 64, jnp.float32, 16, 16, 2e-5, 2e-5),
    ]

    ok = True
    for idx, (sq, sk, b, h, d, dtype, tq, tk, atol, rtol) in enumerate(cases):
        root, sub = jax.random.split(root)
        q, k, v = make(sub, sq, sk, b, h, d, dtype)
        out = torch_dot_product_attention(q, k, v, tq=tq, tk=tk)
        out = jax.block_until_ready(out)
        ref = torch_dot_product_attention_ref(q, k, v)
        good = out.shape == (sq, b, h * d)
        good = good and bool(jnp.allclose(out.astype(jnp.float32),
                                          ref.astype(jnp.float32),
                                          atol=atol, rtol=rtol))
        ok = ok and good

    if ok:
        print("KERNEL_OK")
    else:
        print("KERNEL_MISMATCH")
</pallas_src>

<mosaic_0001>
module attributes {stable_mosaic.version = 11 : i64} {
  func.func @_attn_fwd_kernel(%arg0: i32, %arg1: i32, %arg2: i32, %arg3: memref<1x8x32xf32, #tpu.memory_space<vmem>>, %arg4: memref<1x8x32xf32, #tpu.memory_space<vmem>>, %arg5: memref<1x8x32xf32, #tpu.memory_space<vmem>>, %arg6: memref<1x8x32xf32, #tpu.memory_space<vmem>>, %arg7: memref<8x128xf32, #tpu.memory_space<vmem>>, %arg8: memref<8x128xf32, #tpu.memory_space<vmem>>, %arg9: memref<8x32xf32, #tpu.memory_space<vmem>>) attributes {dimension_semantics = [#tpu.dimension_semantics<parallel>, #tpu.dimension_semantics<parallel>, #tpu.dimension_semantics<arbitrary>], iteration_bounds = array<i64: 4, 1, 1>, scalar_prefetch = 0 : i64, scratch_operands = 3 : i64, tpu.core_type = #tpu.core_type<tc>, window_params = [{transform_indices = @transform_0, window_bounds = array<i64: 1, 8, 32>}, {transform_indices = @transform_1, window_bounds = array<i64: 1, 8, 32>}, {transform_indices = @transform_2, window_bounds = array<i64: 1, 8, 32>}, {transform_indices = @transform_3, window_bounds = array<i64: 1, 8, 32>}]} {
    %c0_i32 = arith.constant 0 : i32
    %0 = arith.cmpi eq, %arg2, %c0_i32 : i32
    %1 = arith.extui %0 : i1 to i32
    %c0_i32_0 = arith.constant 0 : i32
    %2 = arith.cmpi ne, %1, %c0_i32_0 : i32
    scf.if %2 {
      %cst_27 = arith.constant 0xFF800000 : f32
      %41 = vector.broadcast %cst_27 : f32 to vector<8x128xf32>
      %c0_28 = arith.constant 0 : index
      %c0_29 = arith.constant 0 : index
      %42 = vector.load %arg7[%c0_28, %c0_29] : memref<8x128xf32, #tpu.memory_space<vmem>>, vector<8x128xf32>
      tpu.vector_store %arg7[%c0_28, %c0_29], %41 {strides = array<i32>} : memref<8x128xf32, #tpu.memory_space<vmem>>, vector<8x128xf32>,
      %cst_30 = arith.constant 0.000000e+00 : f32
      %43 = vector.broadcast %cst_30 : f32 to vector<8x128xf32>
      %c0_31 = arith.constant 0 : index
      %c0_32 = arith.constant 0 : index
      %44 = vector.load %arg8[%c0_31, %c0_32] : memref<8x128xf32, #tpu.memory_space<vmem>>, vector<8x128xf32>
      tpu.vector_store %arg8[%c0_31, %c0_32], %43 {strides = array<i32>} : memref<8x128xf32, #tpu.memory_space<vmem>>, vector<8x128xf32>,
      %cst_33 = arith.constant 0.000000e+00 : f32
      %45 = vector.broadcast %cst_33 : f32 to vector<8x32xf32>
      %c0_34 = arith.constant 0 : index
      %c0_35 = arith.constant 0 : index
      %46 = vector.load %arg9[%c0_34, %c0_35] : memref<8x32xf32, #tpu.memory_space<vmem>>, vector<8x32xf32>
      tpu.vector_store %arg9[%c0_34, %c0_35], %45 {strides = array<i32>} : memref<8x32xf32, #tpu.memory_space<vmem>>, vector<8x32xf32>,
    } else {
    }
    %c0 = arith.constant 0 : index
    %c0_1 = arith.constant 0 : index
    %c0_2 = arith.constant 0 : index
    %3 = vector.load %arg3[%c0, %c0_1, %c0_2] : memref<1x8x32xf32, #tpu.memory_space<vmem>>, vector<1x8x32xf32>
    %4 = vector.shape_cast %3 : vector<1x8x32xf32> to vector<8x32xf32>
    %cst = arith.constant 0.176776692 : f32
    %5 = vector.broadcast %cst : f32 to vector<8x32xf32>
    %6 = arith.mulf %4, %5 : vector<8x32xf32>
    %c0_3 = arith.constant 0 : index
    %c0_4 = arith.constant 0 : index
    %c0_5 = arith.constant 0 : index
    %7 = vector.load %arg4[%c0_3, %c0_4, %c0_5] : memref<1x8x32xf32, #tpu.memory_space<vmem>>, vector<1x8x32xf32>
    %8 = vector.shape_cast %7 : vector<1x8x32xf32> to vector<8x32xf32>
    %c0_6 = arith.constant 0 : index
    %c0_7 = arith.constant 0 : index
    %c0_8 = arith.constant 0 : index
    %9 = vector.load %arg5[%c0_6, %c0_7, %c0_8] : memref<1x8x32xf32, #tpu.memory_space<vmem>>, vector<1x8x32xf32>
    %10 = vector.shape_cast %9 : vector<1x8x32xf32> to vector<8x32xf32>
    %cst_9 = arith.constant dense<0.000000e+00> : vector<8x8xf32>
    %11 = tpu.matmul %6, %8, %cst_9 {dimension_numbers = #tpu.dot_dimension_numbers<[1], [1], [0], [0], [0, 0, 1, 0], [], []>} : vector<8x32xf32>, vector<8x32xf32>, vector<8x8xf32> -> vector<8x8xf32>
    %c0_10 = arith.constant 0 : index
    %c0_11 = arith.constant 0 : index
    %12 = vector.load %arg7[%c0_10, %c0_11] : memref<8x128xf32, #tpu.memory_space<vmem>>, vector<8x128xf32>
    %c0_12 = arith.constant 0 : index
    %c0_13 = arith.constant 0 : index
    %13 = vector.load %arg8[%c0_12, %c0_13] : memref<8x128xf32, #tpu.memory_space<vmem>>, vector<8x128xf32>
    %cst_14 = arith.constant dense<0xFF800000> : vector<8xf32>
    %14 = vector.multi_reduction <maximumf>, %11, %cst_14 [1] : vector<8x8xf32> to vector<8xf32>
    %15 = vector.shape_cast %14 : vector<8xf32> to vector<8x1xf32>
    %16 = vector.broadcast %15 : vector<8x1xf32> to vector<8x128xf32>
    %17 = arith.maximumf %12, %16 : vector<8x128xf32>
    %18 = arith.subf %12, %17 : vector<8x128xf32>
    %19 = math.exp %18 : vector<8x128xf32>
    %20 = vector.extract_strided_slice %17 {offsets = [0, 0], sizes = [8, 1], strides = [1, 1]} : vector<8x128xf32> to vector<8x1xf32>
    %21 = vector.broadcast %20 : vector<8x1xf32> to vector<8x8xf32>
    %22 = arith.subf %11, %21 : vector<8x8xf32>
    %23 = math.exp %22 : vector<8x8xf32>
    %24 = arith.mulf %19, %13 : vector<8x128xf32>
    %cst_15 = arith.constant dense<0.000000e+00> : vector<8xf32>
    %25 = vector.multi_reduction <add>, %23, %cst_15 [1] : vector<8x8xf32> to vector<8xf32>
    %26 = vector.shape_cast %25 : vector<8xf32> to vector<8x1xf32>
    %27 = vector.broadcast %26 : vector<8x1xf32> to vector<8x128xf32>
    %28 = arith.addf %24, %27 : vector<8x128xf32>
    %c0_16 = arith.constant 0 : index
    %c0_17 = arith.constant 0 : index
    %29 = vector.load %arg8[%c0_16, %c0_17] : memref<8x128xf32, #tpu.memory_space<vmem>>, vector<8x128xf32>
    tpu.vector_store %arg8[%c0_16, %c0_17], %28 {strides = array<i32>} : memref<8x128xf32, #tpu.memory_space<vmem>>, vector<8x128xf32>,
    %cst_18 = arith.constant dense<0.000000e+00> : vector<8x32xf32>
    %30 = tpu.matmul %23, %10, %cst_18 {dimension_numbers = #tpu.dot_dimension_numbers<[1], [0], [0], [1], [0, 0, 1, 1], [], []>} : vector<8x8xf32>, vector<8x32xf32>, vector<8x32xf32> -> vector<8x32xf32>
    %31 = vector.extract_strided_slice %19 {offsets = [0, 0], sizes = [8, 1], strides = [1, 1]} : vector<8x128xf32> to vector<8x1xf32>
    %c0_19 = arith.constant 0 : index
    %c0_20 = arith.constant 0 : index
    %32 = vector.load %arg9[%c0_19, %c0_20] : memref<8x32xf32, #tpu.memory_space<vmem>>, vector<8x32xf32>
    %33 = vector.broadcast %31 : vector<8x1xf32> to vector<8x32xf32>
    %34 = arith.mulf %33, %32 : vector<8x32xf32>
    %35 = arith.addf %34, %30 : vector<8x32xf32>
    %c0_21 = arith.constant 0 : index
    %c0_22 = arith.constant 0 : index
    %36 = vector.load %arg9[%c0_21, %c0_22] : memref<8x32xf32, #tpu.memory_space<vmem>>, vector<8x32xf32>
    tpu.vector_store %arg9[%c0_21, %c0_22], %35 {strides = array<i32>} : memref<8x32xf32, #tpu.memory_space<vmem>>, vector<8x32xf32>,
    %c0_23 = arith.constant 0 : index
    %c0_24 = arith.constant 0 : index
    %37 = vector.load %arg7[%c0_23, %c0_24] : memref<8x128xf32, #tpu.memory_space<vmem>>, vector<8x128xf32>
    tpu.vector_store %arg7[%c0_23, %c0_24], %17 {strides = array<i32>} : memref<8x128xf32, #tpu.memory_space<vmem>>, vector<8x128xf32>,
    %c0_i32_25 = arith.constant 0 : i32
    %38 = arith.cmpi eq, %arg2, %c0_i32_25 : i32
    %39 = arith.extui %38 : i1 to i32
    %c0_i32_26 = arith.constant 0 : i32
    %40 = arith.cmpi ne, %39, %c0_i32_26 : i32
    scf.if %40 {
      %c0_27 = arith.constant 0 : index
      %c0_28 = arith.constant 0 : index
      %41 = vector.load %arg8[%c0_27, %c0_28] : memref<8x128xf32, #tpu.memory_space<vmem>>, vector<8x128xf32>
      %42 = tpu.reciprocal %41 : vector<8x128xf32> -> vector<8x128xf32>
      %c0_29 = arith.constant 0 : index
      %c0_30 = arith.constant 0 : index
      %43 = vector.load %arg9[%c0_29, %c0_30] : memref<8x32xf32, #tpu.memory_space<vmem>>, vector<8x32xf32>
      %44 = vector.extract_strided_slice %42 {offsets = [0, 0], sizes = [8, 1], strides = [1, 1]} : vector<8x128xf32> to vector<8x1xf32>
      %45 = vector.broadcast %44 : vector<8x1xf32> to vector<8x32xf32>
      %46 = arith.mulf %43, %45 : vector<8x32xf32>
      %c0_31 = arith.constant 0 : index
      %c0_32 = arith.constant 0 : index
      %c0_33 = arith.constant 0 : index
      %47 = vector.load %arg6[%c0_31, %c0_32, %c0_33] : memref<1x8x32xf32, #tpu.memory_space<vmem>>, vector<1x8x32xf32>
      %48 = vector.shape_cast %47 : vector<1x8x32xf32> to vector<8x32xf32>
      %49 = vector.shape_cast %46 : vector<8x32xf32> to vector<1x8x32xf32>
      tpu.vector_store %arg6[%c0_31, %c0_32, %c0_33], %49 {strides = array<i32>} : memref<1x8x32xf32, #tpu.memory_space<vmem>>, vector<1x8x32xf32>,
    } else {
    }
    return
  }
  func.func @transform_0(%arg0: i32, %arg1: i32, %arg2: i32) -> (i32, i32, i32) {
    %c0_i32 = arith.constant 0 : i32
    %c0_i32_0 = arith.constant 0 : i32
    return %arg0, %arg1, %c0_i32 : i32, i32, i32
  }
  func.func @transform_1(%arg0: i32, %arg1: i32, %arg2: i32) -> (i32, i32, i32) {
    %c0_i32 = arith.constant 0 : i32
    %c0_i32_0 = arith.constant 0 : i32
    return %arg0, %arg2, %c0_i32 : i32, i32, i32
  }
  func.func @transform_2(%arg0: i32, %arg1: i32, %arg2: i32) -> (i32, i32, i32) {
    %c0_i32 = arith.constant 0 : i32
    %c0_i32_0 = arith.constant 0 : i32
    return %arg0, %arg2, %c0_i32 : i32, i32, i32
  }
  func.func @transform_3(%arg0: i32, %arg1: i32, %arg2: i32) -> (i32, i32, i32) {
    %c0_i32 = arith.constant 0 : i32
    %c0_i32_0 = arith.constant 0 : i32
    return %arg0, %arg1, %c0_i32 : i32, i32, i32
  }
}

</mosaic_0001>

<llo_original>
// kernel: tpu_custom_call.1
$region0: #{tpu_custom_call.1}
  #allocation0 [shape = 'u32[]', space=smem, size = 0x4, offset = 0x4, fixed_abs, tag = 'smem constant byte address 0x4 - core index']
  #allocation1 [shape = 'u32[144,128]{1,0:T(1,128)}', space=vmem, size = 0x12000, scoped, tag = 'internal scratch']
  #allocation2 [shape = 'f32[8,128]{1,0:T(8,128)}', space=vmem, size = 0x1000, scoped, tag = 'scratch operand']
  #allocation3 [shape = 'f32[8,128]{1,0:T(8,128)}', space=vmem, size = 0x1000, scoped, tag = 'scratch operand']
  #allocation4 [shape = 'f32[8,32]{1,0:T(8,128)}', space=vmem, size = 0x1000, scoped, tag = 'scratch operand']
  %s0 = inlined_call_operand.hbm [shape: f32[4,8,32], index: 0, kind: input, shape index: {}]
  %s1 = inlined_call_operand.hbm [shape: f32[4,8,32], index: 1, kind: input, shape index: {}]
  %s2 = inlined_call_operand.hbm [shape: f32[4,8,32], index: 2, kind: input, shape index: {}]
  %s3 = inlined_call_operand.hbm [shape: f32[4,8,32], index: 3, kind: output, shape index: {}]
  %s4 = sld [smem:[#allocation0]]
  $region65: #{tpu_custom_call.1} parent=0
    _
  %s6 = ssub.s32 1, %s4
  %s7 = scalar_select 0, %s6, %s4
  $region1: #{tpu_custom_call.1} parent=0
    #allocation5 [shape = 'u8[8192]{0}', space=vmem, size = 0x2000, scoped, tag = 'input window, operand 0']
    #allocation6 [shape = 's32[2]{0}', space=sflag, size = 0x8, scoped, tag = 'scoped memory for tpu_custom_call.1']
    #allocation7 [shape = 's32[2]{0}', space=sflag, size = 0x8, scoped, tag = 'scoped memory for tpu_custom_call.1']
    #allocation8 [shape = 'u8[8192]{0}', space=vmem, size = 0x2000, scoped, tag = 'input window, operand 1']
    #allocation9 [shape = 's32[2]{0}', space=sflag, size = 0x8, scoped, tag = 'scoped memory for tpu_custom_call.1']
    #allocation10 [shape = 'u8[8192]{0}', space=vmem, size = 0x2000, scoped, tag = 'input window, operand 2']
    #allocation11 [shape = 'u8[8192]{0}', space=vmem, size = 0x2000, scoped, tag = 'output window, operand 0']
    %8 = vsyncpa [#allocation6], 0
    %s9 = scalar_lea.sflag [#allocation6], 1
    %10 = vsyncpa %s9, 0
    %11 = vsyncpa [#allocation9], 0
    %s12 = scalar_lea.sflag [#allocation9], 1
    %13 = vsyncpa %s12, 0
    %14 = vsyncpa [#allocation7], 0
    %s15 = scalar_lea.sflag [#allocation7], 1
    %16 = vsyncpa %s15, 0
    loop: start=0, step=1, limit=6
    $region2: #{tpu_custom_call.1} parent=1 // loop_pre_header
      _
    $region3: #{tpu_custom_call.1} parent=1 // loop_header
      %s18 = sphi 0, %s22
      %p19 = scmp.ge.s32.totalorder %s18, 6
      %s25 = sphi 0, %s44
      %s26 = sphi 0, %s40
      %s27 = sphi 0, %s36
      %s28 = sphi 0, %s25
      %s29 = sphi 0, %s26
      %s30 = sphi 0, %s27
      %s31 = sphi 0, %s28
      %s32 = sphi 0, %s29
      %s33 = sphi 0, %s30
      %s49 = sphi 0, %s51
      %s52 = sphi 0, %s49
      %s53 = sphi 0, %s52
      %s69 = sphi 0, %s53
      %s77 = sphi 0, %s79
      %s80 = sphi 0, %s77
      %s81 = sphi 0, %s80
      %s97 = sphi 0, %s81
      %s105 = sphi 0, %s107
      %s108 = sphi 0, %s105
      %s109 = sphi 0, %s108
      %s125 = sphi 0, %s109
      %s133 = sphi 0, %s135
      %s136 = sphi 0, %s133
      %s137 = sphi 0, %s136
      %s153 = sphi 0, %s137
    $region4: #{tpu_custom_call.1} parent=1 // loop_header_branch
      %21 = sbr.rel (%p19) target = $region8
    $region5: #{tpu_custom_call.1} parent=1 // loop_body
      %s23 = ssub.s32 %s18, 1
      %s24 = ssub.s32 %s18, 2
      %s34 = sadd.s32 1, %s27
      %p35 = scmp.ge.s32.totalorder %s34, 1
      %s36 = scalar_select %p35, 0, %s34
      %s37 = sadd.s32 1, %s26
      %s38 = scalar_select %p35, %s37, %s26
      %p39 = scmp.ge.s32.totalorder %s38, 1
      %s40 = scalar_select %p39, 0, %s38
      %s41 = sadd.s32 1, %s25
      %s42 = scalar_select %p39, %s41, %s25
      %p43 = scmp.ge.s32.totalorder %s42, 4
      %s44 = scalar_select %p43, 0, %s42
      %s45 = ssub.s32 %s25, %s44
      %s46 = ssub.s32 %s26, %s40
      %s47 = sor.u32 %s45, %s46
      %p48 = scmp.eq.s32.totalorder %s47, 0
      %s50 = sadd.s32 %s49, 1
      %s51 = scalar_select %p48, %s49, %s50
      %p54 = pneg %p48
      %p55 = scmp.eq.s32.totalorder %s18, 3
      %p56 = por %p54, %p55
      %p57 = scmp.ne.s32.totalorder %s49, %s52
      %p58 = scmp.eq.s32.totalorder %s18, 0
      %p59 = por %p57, %p58
      %p60 = scmp.ne.s32.totalorder %s49, %s52
      %p61 = scmp.eq.s32.totalorder %s23, 3
      %p62 = por %p60, %p61
      %p63 = scmp.ne.s32.totalorder %s52, %s53
      %p64 = scmp.eq.s32.totalorder %s23, 0
      %p65 = por %p63, %p64
      %p66 = scmp.ne.s32.totalorder %s52, %s53
      %p67 = scmp.eq.s32.totalorder %s24, 3
      %p68 = por %p66, %p67
      %p70 = scmp.ne.s32.totalorder %s53, %s69
      %p71 = scmp.eq.s32.totalorder %s24, 0
      %p72 = por %p70, %p71
      %s73 = ssub.s32 %s25, %s44
      %s74 = ssub.s32 %s27, %s36
      %s75 = sor.u32 %s73, %s74
      %p76 = scmp.eq.s32.totalorder %s75, 0
      %s78 = sadd.s32 %s77, 1
      %s79 = scalar_select %p76, %s77, %s78
      %p82 = pneg %p76
      %p83 = scmp.eq.s32.totalorder %s18, 3
      %p84 = por %p82, %p83
      %p85 = scmp.ne.s32.totalorder %s77, %s80
      %p86 = scmp.eq.s32.totalorder %s18, 0
      %p87 = por %p85, %p86
      %p88 = scmp.ne.s32.totalorder %s77, %s80
      %p89 = scmp.eq.s32.totalorder %s23, 3
      %p90 = por %p88, %p89
      %p91 = scmp.ne.s32.totalorder %s80, %s81
      %p92 = scmp.eq.s32.totalorder %s23, 0
      %p93 = por %p91, %p92
      %p94 = scmp.ne.s32.totalorder %s80, %s81
      %p95 = scmp.eq.s32.totalorder %s24, 3
      %p96 = por %p94, %p95
      %p98 = scmp.ne.s32.totalorder %s81, %s97
      %p99 = scmp.eq.s32.totalorder %s24, 0
      %p100 = por %p98, %p99
      %s101 = ssub.s32 %s25, %s44
      %s102 = ssub.s32 %s27, %s36
      %s103 = sor.u32 %s101, %s102
      %p104 = scmp.eq.s32.totalorder %s103, 0
      %s106 = sadd.s32 %s105, 1
      %s107 = scalar_select %p104, %s105, %s106
      %p110 = pneg %p104
      %p111 = scmp.eq.s32.totalorder %s18, 3
      %p112 = por %p110, %p111
      %p113 = scmp.ne.s32.totalorder %s105, %s108
      %p114 = scmp.eq.s32.totalorder %s18, 0
      %p115 = por %p113, %p114
      %p116 = scmp.ne.s32.totalorder %s105, %s108
      %p117 = scmp.eq.s32.totalorder %s23, 3
      %p118 = por %p116, %p117
      %p119 = scmp.ne.s32.totalorder %s108, %s109
      %p120 = scmp.eq.s32.totalorder %s23, 0
      %p121 = por %p119, %p120
      %p122 = scmp.ne.s32.totalorder %s108, %s109
      %p123 = scmp.eq.s32.totalorder %s24, 3
      %p124 = por %p122, %p123
      %p126 = scmp.ne.s32.totalorder %s109, %s125
      %p127 = scmp.eq.s32.totalorder %s24, 0
      %p128 = por %p126, %p127
      %s129 = ssub.s32 %s25, %s44
      %s130 = ssub.s32 %s26, %s40
      %s131 = sor.u32 %s129, %s130
      %p132 = scmp.eq.s32.totalorder %s131, 0
      %s134 = sadd.s32 %s133, 1
      %s135 = scalar_select %p132, %s133, %s134
      %p138 = pneg %p132
      %p139 = scmp.eq.s32.totalorder %s18, 3
      %p140 = por %p138, %p139
      %p141 = scmp.ne.s32.totalorder %s133, %s136
      %p142 = scmp.eq.s32.totalorder %s18, 0
      %p143 = por %p141, %p142
      %p144 = scmp.ne.s32.totalorder %s133, %s136
      %p145 = scmp.eq.s32.totalorder %s23, 3
      %p146 = por %p144, %p145
      %p147 = scmp.ne.s32.totalorder %s136, %s137
      %p148 = scmp.eq.s32.totalorder %s23, 0
      %p149 = por %p147, %p148
      %p150 = scmp.ne.s32.totalorder %s136, %s137
      %p151 = scmp.eq.s32.totalorder %s24, 3
      %p152 = por %p150, %p151
      %p154 = scmp.ne.s32.totalorder %s137, %s153
      %p155 = scmp.eq.s32.totalorder %s24, 0
      %p156 = por %p154, %p155
      %p157 = scmp.le.s32.totalorder 1, %s18
      %p158 = scmp.lt.s32.totalorder %s18, 5
      %p159 = pnand %p157, %p158
      %p160 = pneg %p159
      // Predicated region
      $region9: #{tpu_custom_call.1} parent=5 // pred_check
        _
      $region10: #{tpu_custom_call.1} parent=5 // pred_check_branch
        %162 = sbr.rel (%p159) target = $region12
      $region11: #{tpu_custom_call.1} parent=5 // pred_region
        %s163 = ssub.s32 %s18, 1
      $region12: #{tpu_custom_call.1} parent=5 // pred_fallthru
        _
      %p164 = scmp.lt.s32.totalorder %s18, 4
      // Predicated region
      $region13: #{tpu_custom_call.1} parent=5 // pred_check
        %p165 = pneg %p164
      $region14: #{tpu_custom_call.1} parent=5 // pred_check_branch
        %167 = sbr.rel (%p165) target = $region16
      $region15: #{tpu_custom_call.1} parent=5 // pred_region
        // Predicated region
        $region17: #{tpu_custom_call.1} parent=15 // pred_check
          %p168 = pneg %p59
        $region18: #{tpu_custom_call.1} parent=15 // pred_check_branch
          %170 = sbr.rel (%p168) target = $region20
        $region19: #{tpu_custom_call.1} parent=15 // pred_region
          %s171 = sand.u32 %s49, 1
          %s172 = scalar_lea.sflag [#allocation6], %s171
          %s173 = sand.u32 %s49, 1
          %s174 = smul.addr %s173, 8
          %s175 = scalar_lea.vmem [#allocation5], %s174
          %s177 = ssub.s32 128, 128
          %178 = vsyncadd %s172, %s177
          %s179 = sadd.s32 %s26, %s25
          %s180 = smul.addr %s179, 128
          %s181 = scalar_lea.hbm %s0, %s180
          %s183 = sshll.u32 %s175, 4
          %s184 = int_to_ptr.vmem [resolvable:$true] %s183
          %186 = dma.hbm_to_vmem [thread:$0]  %s181, 128, %s184, %s172
        $region20: #{tpu_custom_call.1} parent=15 // pred_fallthru
          _
        // Predicated region
        $region21: #{tpu_custom_call.1} parent=15 // pred_check
          %p187 = pneg %p87
        $region22: #{tpu_custom_call.1} parent=15 // pred_check_branch
          %189 = sbr.rel (%p187) target = $region24
        $region23: #{tpu_custom_call.1} parent=15 // pred_region
          %s190 = sand.u32 %s18, 1
          %s191 = scalar_lea.sflag [#allocation9], %s190
          %s192 = sand.u32 %s77, 1
          %s193 = smul.addr %s192, 8
          %s194 = scalar_lea.vmem [#allocation8], %s193
          %s196 = ssub.s32 128, 128
          %197 = vsyncadd %s191, %s196
          %s198 = sadd.s32 %s27, %s25
          %s199 = smul.addr %s198, 128
          %s200 = scalar_lea.hbm %s1, %s199
          %s202 = sshll.u32 %s194, 4
          %s203 = int_to_ptr.vmem [resolvable:$true] %s202
          %205 = dma.hbm_to_vmem [thread:$0]  %s200, 128, %s203, %s191
        $region24: #{tpu_custom_call.1} parent=15 // pred_fallthru
          _
        // Predicated region
        $region25: #{tpu_custom_call.1} parent=15 // pred_check
          %p206 = pneg %p115
        $region26: #{tpu_custom_call.1} parent=15 // pred_check_branch
          %208 = sbr.rel (%p206) target = $region28
        $region27: #{tpu_custom_call.1} parent=15 // pred_region
          %s209 = sand.u32 %s18, 1
          %s210 = scalar_lea.sflag [#allocation9], %s209
          %s211 = sand.u32 %s105, 1
          %s212 = smul.addr %s211, 8
          %s213 = scalar_lea.vmem [#allocation10], %s212
          %s215 = ssub.s32 128, 128
          %216 = vsyncadd %s210, %s215
          %s217 = sadd.s32 %s27, %s25
          %s218 = smul.addr %s217, 128
          %s219 = scalar_lea.hbm %s2, %s218
          %s221 = sshll.u32 %s213, 4
          %s222 = int_to_ptr.vmem [resolvable:$true] %s221
          %224 = dma.hbm_to_vmem [thread:$0]  %s219, 128, %s222, %s210
        $region28: #{tpu_custom_call.1} parent=15 // pred_fallthru
          _
      $region16: #{tpu_custom_call.1} parent=5 // pred_fallthru
        _
      %p225 = scmp.le.s32.totalorder 1, %s18
      %p226 = scmp.lt.s32.totalorder %s18, 5
      %p227 = pnand %p225, %p226
      %p228 = pneg %p227
      // Predicated region
      $region29: #{tpu_custom_call.1} parent=5 // pred_check
        _
      $region30: #{tpu_custom_call.1} parent=5 // pred_check_branch
        %230 = sbr.rel (%p227) target = $region32
      $region31: #{tpu_custom_call.1} parent=5 // pred_region
        %s231 = ssub.s32 %s18, 1
        %s232 = sand.u32 %s52, 1
        %s233 = scalar_lea.sflag [#allocation6], %s232
        %s234 = sand.u32 %s52, 1
        %s235 = smul.addr %s234, 8
        %s236 = scalar_lea.vmem [#allocation5], %s235
        // Predicated region
        $region33: #{tpu_custom_call.1} parent=31 // pred_check
          %p237 = pneg %p65
        $region34: #{tpu_custom_call.1} parent=31 // pred_check_branch
          %239 = sbr.rel (%p237) target = $region36
        $region35: #{tpu_custom_call.1} parent=31 // pred_region
          %240 = dma.done %s233, 128
        $region36: #{tpu_custom_call.1} parent=31 // pred_fallthru
          _
        %s241 = sand.u32 %s23, 1
        %s242 = scalar_lea.sflag [#allocation9], %s241
        %s243 = sand.u32 %s80, 1
        %s244 = smul.addr %s243, 8
        %s245 = scalar_lea.vmem [#allocation8], %s244
        // Predicated region
        $region37: #{tpu_custom_call.1} parent=31 // pred_check
          %p246 = pneg %p93
        $region38: #{tpu_custom_call.1} parent=31 // pred_check_branch
          %248 = sbr.rel (%p246) target = $region40
        $region39: #{tpu_custom_call.1} parent=31 // pred_region
          %249 = dma.done %s242, 128
        $region40: #{tpu_custom_call.1} parent=31 // pred_fallthru
          _
        %s250 = sand.u32 %s23, 1
        %s251 = scalar_lea.sflag [#allocation9], %s250
        %s252 = sand.u32 %s108, 1
        %s253 = smul.addr %s252, 8
        %s254 = scalar_lea.vmem [#allocation10], %s253
        // Predicated region
        $region41: #{tpu_custom_call.1} parent=31 // pred_check
          %p255 = pneg %p121
        $region42: #{tpu_custom_call.1} parent=31 // pred_check_branch
          %257 = sbr.rel (%p255) target = $region44
        $region43: #{tpu_custom_call.1} parent=31 // pred_region
          %258 = dma.done %s251, 128
        $region44: #{tpu_custom_call.1} parent=31 // pred_fallthru
          _
        %s259 = sand.u32 %s52, 1
        %s260 = scalar_lea.sflag [#allocation6], %s259
        %s261 = sand.u32 %s52, 1
        %s262 = smul.addr %s261, 8
        %s263 = scalar_lea.vmem [#allocation5], %s262
        %p264 = pneg %p65
        %p265 = pneg %p62
        %s266 = sand.u32 %s23, 1
        %s267 = scalar_lea.sflag [#allocation9], %s266
        %s268 = sand.u32 %s80, 1
        %s269 = smul.addr %s268, 8
        %s270 = scalar_lea.vmem [#allocation8], %s269
        %p271 = pneg %p93
        %p272 = pneg %p90
        %s273 = sand.u32 %s23, 1
        %s274 = scalar_lea.sflag [#allocation9], %s273
        %s275 = sand.u32 %s108, 1
        %s276 = smul.addr %s275, 8
        %s277 = scalar_lea.vmem [#allocation10], %s276
        %p278 = pneg %p121
        %p279 = pneg %p118
        %p280 = pneg %p149
        %p281 = pneg %p146
        %s282 = sand.u32 %s136, 1
        %s283 = scalar_lea.sflag [#allocation7], %s282
        %s284 = sand.u32 %s136, 1
        %s285 = smul.addr %s284, 8
        %s286 = scalar_lea.vmem [#allocation11], %s285
        %p287 = scmp.eq.s32.totalorder %s30, 0
        // Predicated region
        $region45: #{tpu_custom_call.1} parent=31 // pred_check
          %p288 = pneg %p287
        $region46: #{tpu_custom_call.1} parent=31 // pred_check_branch
          %290 = sbr.rel (%p288) target = $region48
        $region47: #{tpu_custom_call.1} parent=31 // pred_region
          %291 = vst [vmem:[#allocation2] sm:$0xff] -inf
          %292 = vst [vmem:[#allocation3] sm:$0xff] 0.0
          %vm293 = vcmask 261120
          %294 = vst.msk [vmem:[#allocation4] sm:$0xff] %vm293, 0.0
        $region48: #{tpu_custom_call.1} parent=31 // pred_fallthru
          _
        %v295 = vld [vmem:[%s236] sm:$0xff]
        %v296 = vmul.f32 %v295, 0.17677669
        %v297 = vld [vmem:[%s245] sm:$0xff]
        %v298 = vld [vmem:[%s254] sm:$0xff]
        %vm299 = vcmask 261120
        %v301 = vsel %vm299, %v296, 0
        %v304 = vsel %vm299, %v297, 0
        %306 = vmatprep.subr.mxu0 0.0
        %307 = vmatpush1.xpose.msra.mxu0 %v304
        %308 = vmatprep.subr.mxu0 0.0
        %309 = vmatpush1.xpose.msra.mxu0 0.0
        %310 = vmatprep.subr.mxu0 0.0
        %311 = vmatpush1.xpose.msra.mxu0 0.0
        %312 = vmatprep.subr.mxu0 0.0
        %313 = vmatpush1.xpose.msra.mxu0 0.0
        %314 = vmatprep.subr.mxu0 0.0
        %315 = vmatpush1.xpose.msra.mxu0 0.0
        %316 = vmatprep.subr.mxu0 0.0
        %317 = vmatpush1.xpose.msra.mxu0 0.0
        %318 = vmatprep.subr.mxu0 0.0
        %319 = vmatpush1.xpose.msra.mxu0 0.0
        %320 = vmatprep.subr.mxu0 0.0
        %321 = vmatpush1.xpose.msra.mxu0 0.0
        %322 = vmatprep.subr.mxu0 0.0
        %323 = vmatpush1.xpose.msra.mxu0 0.0
        %324 = vmatprep.subr.mxu0 0.0
        %325 = vmatpush1.xpose.msra.mxu0 0.0
        %326 = vmatprep.subr.mxu0 0.0
        %327 = vmatpush1.xpose.msra.mxu0 0.0
        %328 = vmatprep.subr.mxu0 0.0
        %329 = vmatpush1.xpose.msra.mxu0 0.0
        %330 = vmatprep.subr.mxu0 0.0
        %331 = vmatpush1.xpose.msra.mxu0 0.0
        %332 = vmatprep.subr.mxu0 0.0
        %333 = vmatpush1.xpose.msra.mxu0 0.0
        %334 = vmatprep.subr.mxu0 0.0
        %335 = vmatpush1.xpose.msra.mxu0 0.0
        %336 = vmatprep.subr.mxu0 0.0
        %337 = vmatpush1.xpose.msra.mxu0 0.0
        %338 = vmatprep.subr.mxu0 0.0
        %339 = vmatpush1.xpose.msra.mxu0 0.0
        %340 = vmatprep.subr.mxu0 0.0
        %341 = vmatpush1.xpose.msra.mxu0 0.0
        %342 = vmatprep.subr.mxu0 0.0
        %343 = vmatpush1.xpose.msra.mxu0 0.0
        %344 = vmatprep.subr.mxu0 0.0
        %345 = vmatpush1.xpose.msra.mxu0 0.0
        %346 = vmatprep.subr.mxu0 0.0
        %347 = vmatpush1.xpose.msra.mxu0 0.0
        %348 = vmatprep.subr.mxu0 0.0
        %349 = vmatpush1.xpose.msra.mxu0 0.0
        %350 = vmatprep.subr.mxu0 0.0
        %351 = vmatpush1.xpose.msra.mxu0 0.0
        %352 = vmatprep.subr.mxu0 0.0
        %353 = vmatpush1.xpose.msra.mxu0 0.0
        %354 = vmatprep.subr.mxu0 0.0
        %355 = vmatpush1.xpose.msra.mxu0 0.0
        %356 = vmatprep.subr.mxu0 0.0
        %357 = vmatpush1.xpose.msra.mxu0 0.0
        %358 = vmatprep.subr.mxu0 0.0
        %359 = vmatpush1.xpose.msra.mxu0 0.0
        %360 = vmatprep.subr.mxu0 0.0
        %361 = vmatpush1.xpose.msra.mxu0 0.0
        %362 = vmatprep.subr.mxu0 0.0
        %363 = vmatpush1.xpose.msra.mxu0 0.0
        %364 = vmatprep.subr.mxu0 0.0
        %365 = vmatpush1.xpose.msra.mxu0 0.0
        %366 = vmatprep.subr.mxu0 0.0
        %367 = vmatpush1.xpose.msra.mxu0 0.0
        %368 = vmatprep.subr.mxu0 0.0
        %369 = vmatpush1.xpose.msra.mxu0 0.0
        %370 = vmatprep.mubr.f32.mxu0 0.0
        %371 = vmatmul.mubr.f32.gmra.mrb[0].mxu0 %v301
        %v372 = vpop.f32.mrb[0].mxu0
        %v373 = vadd.f32 0.0, %v372
        %v374 = vpop.f32.mrb[0].mxu0
        %375 = vdwg.mxu0
        %v376 = vld [vmem:[#allocation2] sm:$0xff]
        %v377 = vld [vmem:[#allocation3] sm:$0xff]
        %vm378 = vcmask 64512
        %v379 = vsel %vm378, %v373, -inf
        %380 = vmax.xlane.f32.xlu0 %v379
        %v381 = vpop.xlane.xlu0 %380
        %v382 = vmax.f32 %v376, %v381
        %v383 = vsub.f32 %v376, %v382
        %v384 = vmul.f32 %v383, 1.442695
        %v385 = vpow.pop %v384
        %387 = vset.pattern.permute.xlu0 0
        %388 = vperm.xlu0 %387, %v382
        %v389 = vpop.permute.xlu0 %388
        %v391 = vsub.f32 %v373, %v389
        %v392 = vmul.f32 %v391, 1.442695
        %v393 = vpow.pop %v392
        %v394 = vmul.f32 %v385, %v377
        %v395 = vsel %vm378, %v393, 0.0
        %396 = vadd.xlane.f32.xlu0 %v395
        %v397 = vpop.xlane.xlu0 %396
        %v398 = vadd.f32 %v394, %v397
        %399 = vst [vmem:[#allocation3] sm:$0xff] %v398
        %v401 = vsel %vm378, %v393, 0
        %403 = vmatprep.subr.mxu0 0.0
        %404 = vmatpush1.msra.mxu0 %v298
        %405 = vmatprep.subr.mxu0 0.0
        %406 = vmatpush1.msra.mxu0 0.0
        %407 = vmatprep.subr.mxu0 0.0
        %408 = vmatpush1.msra.mxu0 0.0
        %409 = vmatprep.subr.mxu0 0.0
        %410 = vmatpush1.msra.mxu0 0.0
        %411 = vmatprep.subr.mxu0 0.0
        %412 = vmatpush1.msra.mxu0 0.0
        %413 = vmatprep.subr.mxu0 0.0
        %414 = vmatpush1.msra.mxu0 0.0
        %415 = vmatprep.subr.mxu0 0.0
        %416 = vmatpush1.msra.mxu0 0.0
        %417 = vmatprep.subr.mxu0 0.0
        %418 = vmatpush1.msra.mxu0 0.0
        %419 = vmatprep.subr.mxu0 0.0
        %420 = vmatpush1.msra.mxu0 0.0
        %421 = vmatprep.subr.mxu0 0.0
        %422 = vmatpush1.msra.mxu0 0.0
        %423 = vmatprep.subr.mxu0 0.0
        %424 = vmatpush1.msra.mxu0 0.0
        %425 = vmatprep.subr.mxu0 0.0
        %426 = vmatpush1.msra.mxu0 0.0
        %427 = vmatprep.subr.mxu0 0.0
        %428 = vmatpush1.msra.mxu0 0.0
        %429 = vmatprep.subr.mxu0 0.0
        %430 = vmatpush1.msra.mxu0 0.0
        %431 = vmatprep.subr.mxu0 0.0
        %432 = vmatpush1.msra.mxu0 0.0
        %433 = vmatprep.subr.mxu0 0.0
        %434 = vmatpush1.msra.mxu0 0.0
        %435 = vmatprep.subr.mxu0 0.0
        %436 = vmatpush1.msra.mxu0 0.0
        %437 = vmatprep.subr.mxu0 0.0
        %438 = vmatpush1.msra.mxu0 0.0
        %439 = vmatprep.subr.mxu0 0.0
        %440 = vmatpush1.msra.mxu0 0.0
        %441 = vmatprep.subr.mxu0 0.0
        %442 = vmatpush1.msra.mxu0 0.0
        %443 = vmatprep.subr.mxu0 0.0
        %444 = vmatpush1.msra.mxu0 0.0
        %445 = vmatprep.subr.mxu0 0.0
        %446 = vmatpush1.msra.mxu0 0.0
        %447 = vmatprep.subr.mxu0 0.0
        %448 = vmatpush1.msra.mxu0 0.0
        %449 = vmatprep.subr.mxu0 0.0
        %450 = vmatpush1.msra.mxu0 0.0
        %451 = vmatprep.subr.mxu0 0.0
        %452 = vmatpush1.msra.mxu0 0.0
        %453 = vmatprep.subr.mxu0 0.0
        %454 = vmatpush1.msra.mxu0 0.0
        %455 = vmatprep.subr.mxu0 0.0
        %456 = vmatpush1.msra.mxu0 0.0
        %457 = vmatprep.subr.mxu0 0.0
        %458 = vmatpush1.msra.mxu0 0.0
        %459 = vmatprep.subr.mxu0 0.0
        %460 = vmatpush1.msra.mxu0 0.0
        %461 = vmatprep.subr.mxu0 0.0
        %462 = vmatpush1.msra.mxu0 0.0
        %463 = vmatprep.subr.mxu0 0.0
        %464 = vmatpush1.msra.mxu0 0.0
        %465 = vmatprep.subr.mxu0 0.0
        %466 = vmatpush1.msra.mxu0 0.0
        %467 = vmatprep.mubr.f32.mxu0 0.0
        %468 = vmatmul.mubr.f32.gmra.mrb[0].mxu0 %v401
        %v469 = vpop.f32.mrb[0].mxu0
        %v470 = vadd.f32 0.0, %v469
        %v471 = vpop.f32.mrb[0].mxu0
        %472 = vdwg.mxu0
        %v473 = vld [vmem:[#allocation4] sm:$0xff]
        %475 = vset.pattern.permute.xlu0 0
        %476 = vperm.xlu0 %475, %v385
        %v477 = vpop.permute.xlu0 %476
        %v479 = vmul.f32 %v477, %v473
        %v480 = vadd.f32 %v479, %v470
        %481 = vst.msk [vmem:[#allocation4] sm:$0xff] %vm299, %v480
        %482 = vst [vmem:[#allocation2] sm:$0xff] %v382
        // Predicated region
        $region49: #{tpu_custom_call.1} parent=31 // pred_check
          %p483 = pneg %p287
        $region50: #{tpu_custom_call.1} parent=31 // pred_check_branch
          %485 = sbr.rel (%p483) target = $region52
        $region51: #{tpu_custom_call.1} parent=31 // pred_region
          %v486 = vld [vmem:[#allocation3] sm:$0xff]
          %v487 = vrcp.pop %v486
          %v488 = vld [vmem:[#allocation4] sm:$0xff]
          %490 = vset.pattern.permute.xlu0 0
          %491 = vperm.xlu0 %490, %v487
          %v492 = vpop.permute.xlu0 %491
          %v494 = vmul.f32 %v488, %v492
          %495 = vst.msk [vmem:[%s286] sm:$0xff] %vm299, %v494
        $region52: #{tpu_custom_call.1} parent=31 // pred_fallthru
          _
        %s496 = sand.u32 %s136, 1
        %s497 = scalar_lea.sflag [#allocation7], %s496
        %s498 = sand.u32 %s136, 1
        %s499 = smul.addr %s498, 8
        %s500 = scalar_lea.vmem [#allocation11], %s499
        // Predicated region
        $region53: #{tpu_custom_call.1} parent=31 // pred_check
          %p501 = pneg %p146
        $region54: #{tpu_custom_call.1} parent=31 // pred_check_branch
          %503 = sbr.rel (%p501) target = $region56
        $region55: #{tpu_custom_call.1} parent=31 // pred_region
          %s505 = ssub.s32 128, 128
          %506 = vsyncadd %s497, %s505
          %s507 = sadd.s32 %s29, %s28
          %s508 = smul.addr %s507, 128
          %s509 = scalar_lea.hbm %s3, %s508
          %s511 = sshll.u32 %s500, 4
          %s512 = int_to_ptr.vmem [resolvable:$true] %s511
          %514 = dma.vmem_to_hbm [thread:$0]  %s512, 128, %s509, %s497
        $region56: #{tpu_custom_call.1} parent=31 // pred_fallthru
          _
      $region32: #{tpu_custom_call.1} parent=5 // pred_fallthru
        _
      %p515 = scmp.le.s32.totalorder 2, %s18
      // Predicated region
      $region57: #{tpu_custom_call.1} parent=5 // pred_check
        %p516 = pneg %p515
      $region58: #{tpu_custom_call.1} parent=5 // pred_check_branch
        %518 = sbr.rel (%p516) target = $region60
      $region59: #{tpu_custom_call.1} parent=5 // pred_region
        %s519 = ssub.s32 %s18, 2
        // Predicated region
        $region61: #{tpu_custom_call.1} parent=59 // pred_check
          %p520 = pneg %p152
        $region62: #{tpu_custom_call.1} parent=59 // pred_check_branch
          %522 = sbr.rel (%p520) target = $region64
        $region63: #{tpu_custom_call.1} parent=59 // pred_region
          %s523 = sand.u32 %s137, 1
          %s524 = scalar_lea.sflag [#allocation7], %s523
          %s525 = sand.u32 %s137, 1
          %s526 = smul.addr %s525, 8
          %s527 = scalar_lea.vmem [#allocation11], %s526
          %528 = dma.done %s524, 128
        $region64: #{tpu_custom_call.1} parent=59 // pred_fallthru
          _
      $region60: #{tpu_custom_call.1} parent=5 // pred_fallthru
        _
    $region6: #{tpu_custom_call.1} parent=1 // loop_footer
      %s22 = sadd.s32 1, %s18
    $region7: #{tpu_custom_call.1} parent=1 // loop_footer_branch
      %17 = sbr.rel target = $region3
    $region8: #{tpu_custom_call.1} parent=1 // loop_exit
      _
    %529 = vsyncpa [#allocation6], 1
    %s530 = scalar_lea.sflag [#allocation6], 1
    %531 = vsyncpa %s530, 1
    %532 = vsyncpa [#allocation9], 1
    %s533 = scalar_lea.sflag [#allocation9], 1
    %534 = vsyncpa %s533, 1
    %535 = vsyncpa [#allocation7], 1
    %s536 = scalar_lea.sflag [#allocation7], 1
    %537 = vsyncpa %s536, 1

</llo_original>
